<compile_context>
chip_gen: v7x
topology: tpu7x:2x2x1
jax: 0.10.0
libtpu: 0.0.40
codegen_flags: <defaults>
</compile_context>

<pallas_src>
import math
import jax
import jax.numpy as jnp
from jax.experimental import pallas as pl
from jax.experimental.pallas import tpu as pltpu


def _phased_lstm_seq_kernel(gx_ref, t_ref, w_hh_ref, inv_tau_ref, r_sc_ref,
                            two_over_s_ref, h0_ref, c0_ref,
                            out_ref, h_sc, c_sc):
    H = c0_ref.shape[-1]
    step = pl.program_id(0)

    @pl.when(step == 0)
    def _():
        h_sc[...] = h0_ref[...]
        c_sc[...] = c0_ref[...]

    h = h_sc[...]                       # (B, H) f32, carried across grid steps
    c = c_sc[...]

    # Recurrent half of the gates; gx already holds x_t @ W_ih^T + (b_ih + b_hh)
    # with the g-gate block pre-scaled by 2 (see prepare_params).
    gates = gx_ref[...] + jnp.dot(h.astype(w_hh_ref.dtype), w_hh_ref[...],
                                  preferred_element_type=jnp.float32)   # (B, 4H)

    # Single EUP pass over the packed (B, 4H) vreg; tanh(g) = 2*sigmoid(2g) - 1.
    sig = jax.nn.sigmoid(gates)
    i_g = sig[:, 0 * H:1 * H]
    f_g = sig[:, 1 * H:2 * H]
    g_g = 2.0 * sig[:, 2 * H:3 * H] - 1.0
    o_g = sig[:, 3 * H:4 * H]

    c_lstm = f_g * c + i_g * g_g
    h_lstm = o_g * jnp.tanh(c_lstm)     # the one unavoidable second EUP pass

    # Division-free time gate: phi = frac(t/tau - r/tau), k = triangle(2*phi/s).
    # TODO(synk): for very large absolute times with tiny tau, frac() loses
    # low-order bits vs. the torch ((t-r) mod tau)/tau form; compute the phase
    # in f64 on host if exactness at that scale matters.
    q = t_ref[...] * inv_tau_ref[...] - r_sc_ref[...]     # (B,1)*(1,H)-(1,H) -> (B,H)
    phi = q - jnp.floor(q)
    u = phi * two_over_s_ref[...]
    k = jnp.where(u < 1.0, u, jnp.where(u < 2.0, 2.0 - u, 0.0))

    h_new = h + k * (h_lstm - h)
    c_new = c + k * (c_lstm - c)

    h_sc[...] = h_new
    c_sc[...] = c_new
    out_ref[0] = h_new                  # packed (2, B, H) writeback block
    out_ref[1] = c_new


def prepare_params(w_ih, w_hh, b_ih, b_hh, tau, r, s, *, mxu_dtype=jnp.bfloat16):
    """One-time parameter preparation (hoisted out of the hot path).

    PyTorch-layout weights w_ih:(4H,I), w_hh:(4H,H) are transposed; the g-gate
    (third) block of the weights and fused bias is scaled by 2 so the kernel can
    use tanh(x) = 2*sigmoid(2x) - 1 with a single sigmoid pass; weights are cast
    to bf16 for the MXU (f32 accumulation); 1/tau, r/tau and 2/s are precomputed
    exactly in f32.
    """
    tau = jnp.asarray(tau, jnp.float32)
    H = tau.shape[-1]
    gate_scale = jnp.concatenate([jnp.ones((2 * H,), jnp.float32),
                                  jnp.full((H,), 2.0, jnp.float32),
                                  jnp.ones((H,), jnp.float32)])       # [i, f, g, o]
    w_ih_t = (jnp.asarray(w_ih, jnp.float32).T * gate_scale[None, :]).astype(mxu_dtype)
    w_hh_t = (jnp.asarray(w_hh, jnp.float32).T * gate_scale[None, :]).astype(mxu_dtype)
    bias = ((jnp.asarray(b_ih, jnp.float32) + jnp.asarray(b_hh, jnp.float32))
            * gate_scale).reshape(1, 4 * H)
    inv_tau = (1.0 / tau).reshape(1, H)
    r_scaled = jnp.asarray(r, jnp.float32).reshape(1, H) * inv_tau
    two_over_s = (2.0 / jnp.asarray(s, jnp.float32)).reshape(1, H)
    return w_ih_t, w_hh_t, bias, inv_tau, r_scaled, two_over_s


def phased_lstm_sequence(xs, times, h0, c0, params):
    """Run T Phased-LSTM steps in a single pallas_call.

    xs:(T,B,I) times:(T,B,1) h0,c0:(B,H) -> (h_seq, c_seq), each (T,B,H)."""
    w_ih_t, w_hh_t, bias, inv_tau, r_scaled, two_over_s = params
    T, B, I = xs.shape
    H = h0.shape[-1]

    # Non-recurrent pre-GEMM over all T at once (big-M MXU matmul handled by
    # XLA; data-parallel across both TensorCores on v7x).
    gx = jnp.dot(xs.reshape(T * B, I).astype(w_ih_t.dtype), w_ih_t,
                 preferred_element_type=jnp.float32).reshape(T, B, 4 * H) + bias

    const = lambda t: (0, 0)
    out = pl.pallas_call(
        _phased_lstm_seq_kernel,
        grid_spec=pltpu.PrefetchScalarGridSpec(
            num_scalar_prefetch=0,
            grid=(T,),
            in_specs=[
                pl.BlockSpec((None, B, 4 * H), lambda t: (t, 0, 0)),   # gx_t   (streamed)
                pl.BlockSpec((None, B, 1), lambda t: (t, 0, 0)),       # time_t (streamed)
                pl.BlockSpec((H, 4 * H), const),                       # W_hh^T (resident)
                pl.BlockSpec((1, H), const),                           # 1/tau  (resident)
                pl.BlockSpec((1, H), const),                           # r/tau  (resident)
                pl.BlockSpec((1, H), const),                           # 2/s    (resident)
                pl.BlockSpec((B, H), const),                           # h0     (resident)
                pl.BlockSpec((B, H), const),                           # c0     (resident)
            ],
            out_specs=pl.BlockSpec((None, 2, B, H), lambda t: (t, 0, 0, 0)),
            scratch_shapes=[pltpu.VMEM((B, H), jnp.float32),           # h carry
                            pltpu.VMEM((B, H), jnp.float32)],          # c carry
        ),
        out_shape=jax.ShapeDtypeStruct((T, 2, B, H), jnp.float32),
        compiler_params=pltpu.CompilerParams(
            dimension_semantics=("arbitrary",)),
    )(gx, jnp.asarray(times, jnp.float32), w_hh_t, inv_tau, r_scaled,
      two_over_s, jnp.asarray(h0, jnp.float32), jnp.asarray(c0, jnp.float32))
    return out[:, 0], out[:, 1]


def phased_lstm_cell(x, time, hidden, params):
    """Single Phased-LSTM step, matching the torch module's forward().

    x:(B,I) time:(B,1) hidden: None or (h, c) each (B,H)."""
    B = x.shape[0]
    H = params[1].shape[0]          # w_hh_t is (H, 4H)
    if hidden is None:
        h = jnp.zeros((B, H), jnp.float32)
        c = jnp.zeros((B, H), jnp.float32)
    else:
        h, c = hidden
    h_seq, c_seq = phased_lstm_sequence(
        jnp.asarray(x, jnp.float32)[None],
        jnp.asarray(time, jnp.float32)[None], h, c, params)
    return h_seq[0], c_seq[0]


if __name__ == "__main__":
    B, I, H, T = 8, 32, 32, 8   # batch, input_size, hidden_size, sequence length

    key = jax.random.PRNGKey(0)
    keys = jax.random.split(key, 10)

    # Deterministic parameter init mirroring the module's __init__ / reset_parameters.
    kbound = 1.0 / math.sqrt(H)
    w_ih = jax.random.uniform(keys[0], (4 * H, I), jnp.float32, -kbound, kbound)
    w_hh = jax.random.uniform(keys[1], (4 * H, H), jnp.float32, -kbound, kbound)
    b_ih = jax.random.uniform(keys[2], (4 * H,), jnp.float32, -kbound, kbound)
    b_hh = jax.random.uniform(keys[3], (4 * H,), jnp.float32, -kbound, kbound)
    tau = jax.random.uniform(keys[4], (H,), jnp.float32, 1.0, 1000.0)
    r = jax.random.uniform(keys[5], (H,), jnp.float32, 0.0, 1.0)
    s = jnp.full((H,), 0.05, jnp.float32)
    # TODO(synk): the module also defines self.time_gate = nn.Linear(I, 3H) but
    # never uses it in forward(); it is intentionally omitted here.

    xs = jax.random.normal(keys[6], (T, B, I), jnp.float32)
    # Irregular, strictly increasing per-sample timestamps, shape (T, B, 1).
    dts = jax.random.uniform(keys[7], (T, B, 1), jnp.float32, 0.1, 50.0)
    times = jnp.cumsum(dts, axis=0)

    params = prepare_params(w_ih, w_hh, b_ih, b_hh, tau, r, s)  # once, outside all steps

    # --- single step (module forward semantics, hidden=None) ---
    cell = jax.jit(lambda x, t: phased_lstm_cell(x, t, None, params))
    h1, c1 = cell(xs[0], times[0])
    jax.block_until_ready((h1, c1))

    # --- full T-step recurrence fused into one pallas_call ---
    seq = jax.jit(lambda a, b, h, c: phased_lstm_sequence(a, b, h, c, params))
    h0 = jnp.zeros((B, H), jnp.float32)
    c0 = jnp.zeros((B, H), jnp.float32)
    h_seq, c_seq = seq(xs, times, h0, c0)
    jax.block_until_ready((h_seq, c_seq))

    # --- pure-JAX f32 reference following the literal torch-module math ---
    def ref_step(x, t, h, c):
        gates = x @ w_ih.T + b_ih + h @ w_hh.T + b_hh
        i_g = jax.nn.sigmoid(gates[:, 0 * H:1 * H])
        f_g = jax.nn.sigmoid(gates[:, 1 * H:2 * H])
        g_g = jnp.tanh(gates[:, 2 * H:3 * H])
        o_g = jax.nn.sigmoid(gates[:, 3 * H:4 * H])
        c_l = f_g * c + i_g * g_g
        h_l = o_g * jnp.tanh(c_l)
        phi = jnp.mod(t - r[None, :], tau[None, :]) / tau[None, :]
        k = jnp.where(phi < s / 2, 2 * phi / s,
                      jnp.where(phi < s, 2 - 2 * phi / s, 0.0))
        return k * h_l + (1 - k) * h, k * c_l + (1 - k) * c

    h_ref, c_ref = h0, c0
    hs_ref, cs_ref = [], []
    for step in range(T):
        h_ref, c_ref = ref_step(xs[step], times[step], h_ref, c_ref)
        hs_ref.append(h_ref)
        cs_ref.append(c_ref)
    hs_ref = jnp.stack(hs_ref)
    cs_ref = jnp.stack(cs_ref)

    # bf16 MXU operands with f32 accumulation -> tolerance a bit above f32-exact.
    assert jnp.allclose(h1, hs_ref[0], atol=2e-2, rtol=1e-2)
    assert jnp.allclose(c1, cs_ref[0], atol=2e-2, rtol=1e-2)
    assert jnp.allclose(h_seq, hs_ref, atol=2e-2, rtol=1e-2)
    assert jnp.allclose(c_seq, cs_ref, atol=2e-2, rtol=1e-2)

    print("KERNEL_OK")
</pallas_src>

<mosaic_0001>
module attributes {stable_mosaic.version = 11 : i64} {
  func.func @_phased_lstm_seq_kernel(%arg0: i32, %arg1: memref<1x8x128xf32, #tpu.memory_space<vmem>>, %arg2: memref<1x8x1xf32, #tpu.memory_space<vmem>>, %arg3: memref<32x128xbf16, #tpu.memory_space<vmem>>, %arg4: memref<1x32xf32, #tpu.memory_space<vmem>>, %arg5: memref<1x32xf32, #tpu.memory_space<vmem>>, %arg6: memref<1x32xf32, #tpu.memory_space<vmem>>, %arg7: memref<8x32xf32, #tpu.memory_space<vmem>>, %arg8: memref<8x32xf32, #tpu.memory_space<vmem>>, %arg9: memref<1x2x8x32xf32, #tpu.memory_space<vmem>>, %arg10: memref<8x32xf32, #tpu.memory_space<vmem>>, %arg11: memref<8x32xf32, #tpu.memory_space<vmem>>) attributes {dimension_semantics = [#tpu.dimension_semantics<arbitrary>], iteration_bounds = array<i64: 1>, scalar_prefetch = 0 : i64, scratch_operands = 2 : i64, tpu.core_type = #tpu.core_type<tc>, window_params = [{transform_indices = @transform_0, window_bounds = array<i64: 1, 8, 128>}, {transform_indices = @transform_1, window_bounds = array<i64: 1, 8, 1>}, {pipeline_mode = #tpu.pipeline_mode<synchronous>, transform_indices = @transform_2, window_bounds = array<i64: 32, 128>}, {pipeline_mode = #tpu.pipeline_mode<synchronous>, transform_indices = @transform_3, window_bounds = array<i64: 1, 32>}, {pipeline_mode = #tpu.pipeline_mode<synchronous>, transform_indices = @transform_4, window_bounds = array<i64: 1, 32>}, {pipeline_mode = #tpu.pipeline_mode<synchronous>, transform_indices = @transform_5, window_bounds = array<i64: 1, 32>}, {pipeline_mode = #tpu.pipeline_mode<synchronous>, transform_indices = @transform_6, window_bounds = array<i64: 8, 32>}, {pipeline_mode = #tpu.pipeline_mode<synchronous>, transform_indices = @transform_7, window_bounds = array<i64: 8, 32>}, {transform_indices = @transform_8, window_bounds = array<i64: 1, 2, 8, 32>}]} {
    %c0_i32 = arith.constant 0 : i32
    %0 = arith.cmpi eq, %arg0, %c0_i32 : i32
    %1 = arith.extui %0 : i1 to i32
    %c0_i32_0 = arith.constant 0 : i32
    %2 = arith.cmpi ne, %1, %c0_i32_0 : i32
    scf.if %2 {
      %c0_36 = arith.constant 0 : index
      %c0_37 = arith.constant 0 : index
      %66 = vector.load %arg7[%c0_36, %c0_37] : memref<8x32xf32, #tpu.memory_space<vmem>>, vector<8x32xf32>
      %c0_38 = arith.constant 0 : index
      %c0_39 = arith.constant 0 : index
      %67 = vector.load %arg10[%c0_38, %c0_39] : memref<8x32xf32, #tpu.memory_space<vmem>>, vector<8x32xf32>
      tpu.vector_store %arg10[%c0_38, %c0_39], %66 {strides = array<i32>} : memref<8x32xf32, #tpu.memory_space<vmem>>, vector<8x32xf32>,
      %c0_40 = arith.constant 0 : index
      %c0_41 = arith.constant 0 : index
      %68 = vector.load %arg8[%c0_40, %c0_41] : memref<8x32xf32, #tpu.memory_space<vmem>>, vector<8x32xf32>
      %c0_42 = arith.constant 0 : index
      %c0_43 = arith.constant 0 : index
      %69 = vector.load %arg11[%c0_42, %c0_43] : memref<8x32xf32, #tpu.memory_space<vmem>>, vector<8x32xf32>
      tpu.vector_store %arg11[%c0_42, %c0_43], %68 {strides = array<i32>} : memref<8x32xf32, #tpu.memory_space<vmem>>, vector<8x32xf32>,
    } else {
    }
    %c0 = arith.constant 0 : index
    %c0_1 = arith.constant 0 : index
    %3 = vector.load %arg10[%c0, %c0_1] : memref<8x32xf32, #tpu.memory_space<vmem>>, vector<8x32xf32>
    %c0_2 = arith.constant 0 : index
    %c0_3 = arith.constant 0 : index
    %4 = vector.load %arg11[%c0_2, %c0_3] : memref<8x32xf32, #tpu.memory_space<vmem>>, vector<8x32xf32>
    %c0_4 = arith.constant 0 : index
    %c0_5 = arith.constant 0 : index
    %c0_6 = arith.constant 0 : index
    %5 = vector.load %arg1[%c0_4, %c0_5, %c0_6] : memref<1x8x128xf32, #tpu.memory_space<vmem>>, vector<1x8x128xf32>
    %6 = vector.shape_cast %5 : vector<1x8x128xf32> to vector<8x128xf32>
    %7 = arith.truncf %3 : vector<8x32xf32> to vector<8x32xbf16>
    %c0_7 = arith.constant 0 : index
    %c0_8 = arith.constant 0 : index
    %8 = vector.load %arg3[%c0_7, %c0_8] : memref<32x128xbf16, #tpu.memory_space<vmem>>, vector<32x128xbf16>
    %cst = arith.constant dense<0.000000e+00> : vector<8x128xf32>
    %9 = tpu.matmul %7, %8, %cst {dimension_numbers = #tpu.dot_dimension_numbers<[1], [0], [0], [1], [0, 0, 1, 1], [], []>} : vector<8x32xbf16>, vector<32x128xbf16>, vector<8x128xf32> -> vector<8x128xf32>
    %10 = arith.addf %6, %9 : vector<8x128xf32>
    %11 = arith.negf %10 : vector<8x128xf32>
    %12 = math.exp %11 : vector<8x128xf32>
    %cst_9 = arith.constant 1.000000e+00 : f32
    %13 = vector.broadcast %cst_9 : f32 to vector<8x128xf32>
    %14 = arith.addf %13, %12 : vector<8x128xf32>
    %15 = arith.divf %13, %14 : vector<8x128xf32>
    %16 = vector.extract_strided_slice %15 {offsets = [0, 0], sizes = [8, 32], strides = [1, 1]} : vector<8x128xf32> to vector<8x32xf32>
    %17 = vector.extract_strided_slice %15 {offsets = [0, 32], sizes = [8, 32], strides = [1, 1]} : vector<8x128xf32> to vector<8x32xf32>
    %18 = vector.extract_strided_slice %15 {offsets = [0, 64], sizes = [8, 32], strides = [1, 1]} : vector<8x128xf32> to vector<8x32xf32>
    %cst_10 = arith.constant 2.000000e+00 : f32
    %19 = vector.broadcast %cst_10 : f32 to vector<8x32xf32>
    %20 = arith.mulf %19, %18 : vector<8x32xf32>
    %cst_11 = arith.constant 1.000000e+00 : f32
    %21 = vector.broadcast %cst_11 : f32 to vector<8x32xf32>
    %22 = arith.subf %20, %21 : vector<8x32xf32>
    %23 = vector.extract_strided_slice %15 {offsets = [0, 96], sizes = [8, 32], strides = [1, 1]} : vector<8x128xf32> to vector<8x32xf32>
    %24 = arith.mulf %17, %4 : vector<8x32xf32>
    %25 = arith.mulf %16, %22 : vector<8x32xf32>
    %26 = arith.addf %24, %25 : vector<8x32xf32>
    %27 = math.tanh %26 : vector<8x32xf32>
    %28 = arith.mulf %23, %27 : vector<8x32xf32>
    %c0_12 = arith.constant 0 : index
    %c0_13 = arith.constant 0 : index
    %c0_14 = arith.constant 0 : index
    %29 = vector.load %arg2[%c0_12, %c0_13, %c0_14] : memref<1x8x1xf32, #tpu.memory_space<vmem>>, vector<1x8x1xf32>
    %30 = vector.shape_cast %29 : vector<1x8x1xf32> to vector<8x1xf32>
    %c0_15 = arith.constant 0 : index
    %c0_16 = arith.constant 0 : index
    %31 = vector.load %arg4[%c0_15, %c0_16] : memref<1x32xf32, #tpu.memory_space<vmem>>, vector<1x32xf32>
    %32 = vector.broadcast %30 : vector<8x1xf32> to vector<8x32xf32>
    %33 = vector.broadcast %31 : vector<1x32xf32> to vector<8x32xf32>
    %34 = arith.mulf %32, %33 : vector<8x32xf32>
    %c0_17 = arith.constant 0 : index
    %c0_18 = arith.constant 0 : index
    %35 = vector.load %arg5[%c0_17, %c0_18] : memref<1x32xf32, #tpu.memory_space<vmem>>, vector<1x32xf32>
    %36 = vector.broadcast %35 : vector<1x32xf32> to vector<8x32xf32>
    %37 = arith.subf %34, %36 : vector<8x32xf32>
    %38 = math.floor %37 : vector<8x32xf32>
    %39 = arith.subf %37, %38 : vector<8x32xf32>
    %c0_19 = arith.constant 0 : index
    %c0_20 = arith.constant 0 : index
    %40 = vector.load %arg6[%c0_19, %c0_20] : memref<1x32xf32, #tpu.memory_space<vmem>>, vector<1x32xf32>
    %41 = vector.broadcast %40 : vector<1x32xf32> to vector<8x32xf32>
    %42 = arith.mulf %39, %41 : vector<8x32xf32>
    %cst_21 = arith.constant 1.000000e+00 : f32
    %43 = vector.broadcast %cst_21 : f32 to vector<8x32xf32>
    %44 = arith.cmpf olt, %42, %43 : vector<8x32xf32>
    %cst_22 = arith.constant 2.000000e+00 : f32
    %45 = vector.broadcast %cst_22 : f32 to vector<8x32xf32>
    %46 = arith.cmpf olt, %42, %45 : vector<8x32xf32>
    %cst_23 = arith.constant 2.000000e+00 : f32
    %47 = vector.broadcast %cst_23 : f32 to vector<8x32xf32>
    %48 = arith.subf %47, %42 : vector<8x32xf32>
    %cst_24 = arith.constant 0.000000e+00 : f32
    %49 = vector.broadcast %cst_24 : f32 to vector<8x32xf32>
    %50 = arith.select %46, %48, %49 : vector<8x32xi1>, vector<8x32xf32>
    %51 = arith.select %44, %42, %50 : vector<8x32xi1>, vector<8x32xf32>
    %52 = arith.subf %28, %3 : vector<8x32xf32>
    %53 = arith.mulf %51, %52 : vector<8x32xf32>
    %54 = arith.addf %3, %53 : vector<8x32xf32>
    %55 = arith.subf %26, %4 : vector<8x32xf32>
    %56 = arith.mulf %51, %55 : vector<8x32xf32>
    %57 = arith.addf %4, %56 : vector<8x32xf32>
    %c0_25 = arith.constant 0 : index
    %c0_26 = arith.constant 0 : index
    %58 = vector.load %arg10[%c0_25, %c0_26] : memref<8x32xf32, #tpu.memory_space<vmem>>, vector<8x32xf32>
    tpu.vector_store %arg10[%c0_25, %c0_26], %54 {strides = array<i32>} : memref<8x32xf32, #tpu.memory_space<vmem>>, vector<8x32xf32>,
    %c0_27 = arith.constant 0 : index
    %c0_28 = arith.constant 0 : index
    %59 = vector.load %arg11[%c0_27, %c0_28] : memref<8x32xf32, #tpu.memory_space<vmem>>, vector<8x32xf32>
    tpu.vector_store %arg11[%c0_27, %c0_28], %57 {strides = array<i32>} : memref<8x32xf32, #tpu.memory_space<vmem>>, vector<8x32xf32>,
    %c0_29 = arith.constant 0 : index
    %c0_30 = arith.constant 0 : index
    %c0_31 = arith.constant 0 : index
    %c0_32 = arith.constant 0 : index
    %60 = vector.load %arg9[%c0_29, %c0_30, %c0_31, %c0_32] : memref<1x2x8x32xf32, #tpu.memory_space<vmem>>, vector<1x1x8x32xf32>
    %61 = vector.shape_cast %60 : vector<1x1x8x32xf32> to vector<8x32xf32>
    %62 = vector.shape_cast %54 : vector<8x32xf32> to vector<1x1x8x32xf32>
    tpu.vector_store %arg9[%c0_29, %c0_30, %c0_31, %c0_32], %62 {strides = array<i32>} : memref<1x2x8x32xf32, #tpu.memory_space<vmem>>, vector<1x1x8x32xf32>,
    %c0_33 = arith.constant 0 : index
    %c1 = arith.constant 1 : index
    %c0_34 = arith.constant 0 : index
    %c0_35 = arith.constant 0 : index
    %63 = vector.load %arg9[%c0_33, %c1, %c0_34, %c0_35] : memref<1x2x8x32xf32, #tpu.memory_space<vmem>>, vector<1x1x8x32xf32>
    %64 = vector.shape_cast %63 : vector<1x1x8x32xf32> to vector<8x32xf32>
    %65 = vector.shape_cast %57 : vector<8x32xf32> to vector<1x1x8x32xf32>
    tpu.vector_store %arg9[%c0_33, %c1, %c0_34, %c0_35], %65 {strides = array<i32>} : memref<1x2x8x32xf32, #tpu.memory_space<vmem>>, vector<1x1x8x32xf32>,
    return
  }
  func.func @transform_0(%arg0: i32) -> (i32, i32, i32) {
    %c0_i32 = arith.constant 0 : i32
    %c0_i32_0 = arith.constant 0 : i32
    %c0_i32_1 = arith.constant 0 : i32
    return %arg0, %c0_i32, %c0_i32_0 : i32, i32, i32
  }
  func.func @transform_1(%arg0: i32) -> (i32, i32, i32) {
    %c0_i32 = arith.constant 0 : i32
    %c0_i32_0 = arith.constant 0 : i32
    %c0_i32_1 = arith.constant 0 : i32
    return %arg0, %c0_i32, %c0_i32_0 : i32, i32, i32
  }
  func.func @transform_2(%arg0: i32) -> (i32, i32) {
    %c0_i32 = arith.constant 0 : i32
    %c0_i32_0 = arith.constant 0 : i32
    %c0_i32_1 = arith.constant 0 : i32
    return %c0_i32, %c0_i32_0 : i32, i32
  }
  func.func @transform_3(%arg0: i32) -> (i32, i32) {
    %c0_i32 = arith.constant 0 : i32
    %c0_i32_0 = arith.constant 0 : i32
    %c0_i32_1 = arith.constant 0 : i32
    return %c0_i32, %c0_i32_0 : i32, i32
  }
  func.func @transform_4(%arg0: i32) -> (i32, i32) {
    %c0_i32 = arith.constant 0 : i32
    %c0_i32_0 = arith.constant 0 : i32
    %c0_i32_1 = arith.constant 0 : i32
    return %c0_i32, %c0_i32_0 : i32, i32
  }
  func.func @transform_5(%arg0: i32) -> (i32, i32) {
    %c0_i32 = arith.constant 0 : i32
    %c0_i32_0 = arith.constant 0 : i32
    %c0_i32_1 = arith.constant 0 : i32
    return %c0_i32, %c0_i32_0 : i32, i32
  }
  func.func @transform_6(%arg0: i32) -> (i32, i32) {
    %c0_i32 = arith.constant 0 : i32
    %c0_i32_0 = arith.constant 0 : i32
    %c0_i32_1 = arith.constant 0 : i32
    return %c0_i32, %c0_i32_0 : i32, i32
  }
  func.func @transform_7(%arg0: i32) -> (i32, i32) {
    %c0_i32 = arith.constant 0 : i32
    %c0_i32_0 = arith.constant 0 : i32
    %c0_i32_1 = arith.constant 0 : i32
    return %c0_i32, %c0_i32_0 : i32, i32
  }
  func.func @transform_8(%arg0: i32) -> (i32, i32, i32, i32) {
    %c0_i32 = arith.constant 0 : i32
    %c0_i32_0 = arith.constant 0 : i32
    %c0_i32_1 = arith.constant 0 : i32
    %c0_i32_2 = arith.constant 0 : i32
    return %arg0, %c0_i32, %c0_i32_0, %c0_i32_1 : i32, i32, i32, i32
  }
}

</mosaic_0001>

<llo_original>
// kernel: _lambda_.1
$region0: #{_lambda_.1}
  #allocation0 [shape = 'u32[]', space=smem, size = 0x4, offset = 0x4, fixed_abs, tag = 'smem constant byte address 0x4 - core index']
  #allocation1 [shape = 'u32[144,128]{1,0:T(1,128)}', space=vmem, size = 0x12000, scoped, tag = 'internal scratch']
  #allocation2 [shape = 'f32[8,32]{1,0:T(8,128)}', space=vmem, size = 0x1000, scoped, tag = 'scratch operand']
  #allocation3 [shape = 'f32[8,32]{1,0:T(8,128)}', space=vmem, size = 0x1000, scoped, tag = 'scratch operand']
  %s0 = inlined_call_operand.vmem [shape: f32[1,8,128], index: 0, kind: input, shape index: {}]
  %s1 = inlined_call_operand.vmem [shape: f32[1,8,1], index: 1, kind: input, shape index: {}]
  %s2 = inlined_call_operand.vmem [shape: bf16[32,128], index: 2, kind: input, shape index: {}]
  %s3 = inlined_call_operand.vmem [shape: f32[1,32], index: 3, kind: input, shape index: {}]
  %s4 = inlined_call_operand.vmem [shape: f32[1,32], index: 4, kind: input, shape index: {}]
  %s5 = inlined_call_operand.vmem [shape: f32[1,32], index: 5, kind: input, shape index: {}]
  %s6 = inlined_call_operand.vmem [shape: f32[8,32], index: 6, kind: input, shape index: {}, may-alias: {6,7}]
  %s7 = inlined_call_operand.vmem [shape: f32[8,32], index: 7, kind: input, shape index: {}, may-alias: {6,7}]
  %s8 = inlined_call_operand.vmem [shape: f32[1,2,8,32], index: 8, kind: output, shape index: {}]
  %s9 = sld [smem:[#allocation0]]
  $region46: #{_lambda_.1} parent=0
    _
  %s11 = ssub.s32 1, %s9
  %s12 = scalar_select 0, %s11, %s9
  // Predicated region
  $region2: #{_lambda_.1} parent=0 // pred_check
    _
  $region3: #{_lambda_.1} parent=0 // pred_check_branch
    %14 = sbr.rel (0) target = $region5
  $region4: #{_lambda_.1} parent=0 // pred_region
    _
  $region5: #{_lambda_.1} parent=0 // pred_fallthru
    _
  // Predicated region
  $region6: #{_lambda_.1} parent=0 // pred_check
    _
  $region7: #{_lambda_.1} parent=0 // pred_check_branch
    %16 = sbr.rel (0) target = $region9
  $region8: #{_lambda_.1} parent=0 // pred_region
    _
  $region9: #{_lambda_.1} parent=0 // pred_fallthru
    _
  // Predicated region
  $region10: #{_lambda_.1} parent=0 // pred_check
    _
  $region11: #{_lambda_.1} parent=0 // pred_check_branch
    %18 = sbr.rel (0) target = $region13
  $region12: #{_lambda_.1} parent=0 // pred_region
    _
  $region13: #{_lambda_.1} parent=0 // pred_fallthru
    _
  // Predicated region
  $region14: #{_lambda_.1} parent=0 // pred_check
    _
  $region15: #{_lambda_.1} parent=0 // pred_check_branch
    %20 = sbr.rel (0) target = $region17
  $region16: #{_lambda_.1} parent=0 // pred_region
    _
  $region17: #{_lambda_.1} parent=0 // pred_fallthru
    _
  // Predicated region
  $region18: #{_lambda_.1} parent=0 // pred_check
    _
  $region19: #{_lambda_.1} parent=0 // pred_check_branch
    %22 = sbr.rel (0) target = $region21
  $region20: #{_lambda_.1} parent=0 // pred_region
    _
  $region21: #{_lambda_.1} parent=0 // pred_fallthru
    _
  // Predicated region
  $region22: #{_lambda_.1} parent=0 // pred_check
    _
  $region23: #{_lambda_.1} parent=0 // pred_check_branch
    %24 = sbr.rel (0) target = $region25
  $region24: #{_lambda_.1} parent=0 // pred_region
    _
  $region25: #{_lambda_.1} parent=0 // pred_fallthru
    _
  // Predicated region
  $region26: #{_lambda_.1} parent=0 // pred_check
    _
  $region27: #{_lambda_.1} parent=0 // pred_check_branch
    %26 = sbr.rel (0) target = $region29
  $region28: #{_lambda_.1} parent=0 // pred_region
    _
  $region29: #{_lambda_.1} parent=0 // pred_fallthru
    _
  // Predicated region
  $region30: #{_lambda_.1} parent=0 // pred_check
    _
  $region31: #{_lambda_.1} parent=0 // pred_check_branch
    %28 = sbr.rel (0) target = $region33
  $region32: #{_lambda_.1} parent=0 // pred_region
    _
  $region33: #{_lambda_.1} parent=0 // pred_fallthru
    _
  %p30 = scmp.eq.s32.totalorder 0, 0
  // Predicated region
  $region34: #{_lambda_.1} parent=0 // pred_check
    %p31 = pneg %p30
  $region35: #{_lambda_.1} parent=0 // pred_check_branch
    %33 = sbr.rel (%p31) target = $region37
  $region36: #{_lambda_.1} parent=0 // pred_region
    %v34 = vld [vmem:[%s6] sm:$0xff]
    %vm35 = vcmask 261120
    %36 = vst.msk [vmem:[#allocation2] sm:$0xff] %vm35, %v34
    %v37 = vld [vmem:[%s7] sm:$0xff]
    %38 = vst.msk [vmem:[#allocation3] sm:$0xff] %vm35, %v37
  $region37: #{_lambda_.1} parent=0 // pred_fallthru
    _
  %v39 = vld [vmem:[#allocation2] sm:$0xff]
  %v40 = vld [vmem:[#allocation3] sm:$0xff]
  %v41 = vld [vmem:[%s0] sm:$0xff]
  %v42 = vpack.c.bf16 %v39, %v39
  %v43 = vld [vmem:[%s2] sm:$0xf]
  %v44 = vld [vmem:[%s2 + $0x4] sm:$0xf]
  %v45 = vld [vmem:[%s2 + $0x8] sm:$0xf]
  %v46 = vld [vmem:[%s2 + $0xc] sm:$0xf]
  %v51 = vunpack.c.l.b16 %v43
  %v52 = vunpack.c.l.b16 %v44
  %v53 = vunpack.c.l.b16 %v45
  %v54 = vunpack.c.l.b16 %v46
  %v55 = vpack.c.b16 %v52, %v51
  %v56 = vpack.c.b16 %v54, %v53
  %vm59 = vcmask 261120
  %v61 = vsel %vm59, %v42, 0
  %63 = vmatprep.subr.bf16.mxu0 0
  %64 = vmatpush1.bf16.msra.mxu0 %v55
  %65 = vmatprep.subr.bf16.mxu0 0
  %66 = vmatpush1.bf16.msra.mxu0 %v56
  %67 = vmatprep.subr.bf16.mxu0 0
  %68 = vmatpush1.bf16.msra.mxu0 0
  %69 = vmatprep.subr.bf16.mxu0 0
  %70 = vmatpush1.bf16.msra.mxu0 0
  %71 = vmatprep.subr.bf16.mxu0 0
  %72 = vmatpush1.bf16.msra.mxu0 0
  %73 = vmatprep.subr.bf16.mxu0 0
  %74 = vmatpush1.bf16.msra.mxu0 0
  %75 = vmatprep.subr.bf16.mxu0 0
  %76 = vmatpush1.bf16.msra.mxu0 0
  %77 = vmatprep.subr.bf16.mxu0 0
  %78 = vmatpush1.bf16.msra.mxu0 0
  %79 = vmatprep.subr.bf16.mxu0 0
  %80 = vmatpush1.bf16.msra.mxu0 0
  %81 = vmatprep.subr.bf16.mxu0 0
  %82 = vmatpush1.bf16.msra.mxu0 0
  %83 = vmatprep.subr.bf16.mxu0 0
  %84 = vmatpush1.bf16.msra.mxu0 0
  %85 = vmatprep.subr.bf16.mxu0 0
  %86 = vmatpush1.bf16.msra.mxu0 0
  %87 = vmatprep.subr.bf16.mxu0 0
  %88 = vmatpush1.bf16.msra.mxu0 0
  %89 = vmatprep.subr.bf16.mxu0 0
  %90 = vmatpush1.bf16.msra.mxu0 0
  %91 = vmatprep.subr.bf16.mxu0 0
  %92 = vmatpush1.bf16.msra.mxu0 0
  %93 = vmatprep.subr.bf16.mxu0 0
  %94 = vmatpush1.bf16.msra.mxu0 0
  %95 = vmatprep.mubr.bf16.mxu0 0
  %96 = vmatmul.mubr.bf16.gmra.mrb[0].mxu0 %v61
  %v97 = vpop.f32.mrb[0].mxu0
  %v98 = vadd.f32 0.0, %v97
  %v99 = vpop.f32.mrb[0].mxu0
  %v100 = vpop.f32.mrb[0].mxu0
  %v101 = vpop.f32.mrb[0].mxu0
  %102 = vdwg.mxu0
  %v103 = vadd.f32 %v41, %v98
  %v104 = vxor.u32 %v103, 2147483648
  %v105 = vmul.f32 %v104, 1.442695
  %v106 = vpow.pop %v105
  %v107 = vadd.f32 %v106, 1.0
  %v108 = vrcp.pop %v107
  %v109 = vmul.f32 1.0, %v108
  %v110 = vmul.f32 %v109, 2.0
  %v111 = vsub.f32 %v110, 1.0
  %113 = vrot.lane.b32.xlu0 %v40, 32
  %v114 = vpop.permute.xlu0 %113
  %v116 = vmul.f32 %v109, %v114
  %118 = vrot.lane.b32.xlu0 %v111, 64
  %v119 = vpop.permute.xlu0 %118
  %v121 = vmul.f32 %v109, %v119
  %123 = vrot.lane.b32.xlu0 %v121, 32
  %v124 = vpop.permute.xlu0 %123
  %v126 = vadd.f32 %v116, %v124
  %v127 = vtanh.pop %v126
  %129 = vrot.lane.b32.xlu0 %v127, 64
  %v130 = vpop.permute.xlu0 %129
  %v132 = vmul.f32 %v109, %v130
  %v133 = vld [vmem:[%s1] sm:$0xff]
  %v134 = vld [vmem:[%s3] sm:$0x1]
  %136 = vset.pattern.permute.xlu0 0
  %137 = vperm.xlu0 %136, %v133
  %v138 = vpop.permute.xlu0 %137
  %v141 = vlaneseq
  %v142 = vshrl.u32 %v141, 7
  %v143 = vsub.s32 0, %v142
  %v144 = vrot.slane %v134, %v143
  %v146 = vmul.f32 %v138, %v144
  %v147 = vld [vmem:[%s4] sm:$0x1]
  %v149 = vlaneseq
  %v150 = vshrl.u32 %v149, 7
  %v151 = vsub.s32 0, %v150
  %v152 = vrot.slane %v147, %v151
  %v154 = vsub.f32 %v146, %v152
  %v155 = vfloor.f32 %v154
  %v156 = vsub.f32 %v154, %v155
  %v157 = vld [vmem:[%s5] sm:$0x1]
  %v159 = vlaneseq
  %v160 = vshrl.u32 %v159, 7
  %v161 = vsub.s32 0, %v160
  %v162 = vrot.slane %v157, %v161
  %v164 = vmul.f32 %v156, %v162
  %vm165 = vcmp.lt.f32.partialorder %v164, 1.0
  %vm166 = vcmp.lt.f32.partialorder %v164, 2.0
  %v167 = vsub.f32 2.0, %v164
  %v168 = vsel %vm166, %v167, 0.0
  %v169 = vsel %vm165, %v164, %v168
  %171 = vrot.lane.b32.xlu0 %v39, 96
  %v172 = vpop.permute.xlu0 %171
  %v174 = vsub.f32 %v132, %v172
  %176 = vrot.lane.b32.xlu0 %v174, 32
  %v177 = vpop.permute.xlu0 %176
  %v179 = vmul.f32 %v169, %v177
  %v180 = vadd.f32 %v39, %v179
  %v181 = vsub.f32 %v126, %v114
  %183 = vrot.lane.b32.xlu0 %v181, 96
  %v184 = vpop.permute.xlu0 %183
  %v186 = vmul.f32 %v169, %v184
  %v187 = vadd.f32 %v40, %v186
  %188 = vst.msk [vmem:[#allocation2] sm:$0xff] %vm59, %v180
  %189 = vst.msk [vmem:[#allocation3] sm:$0xff] %vm59, %v187
  %190 = vst.msk [vmem:[%s8] sm:$0xff] %vm59, %v180
  %s191 = scalar_lea.vmem %s8, 8
  %192 = vst.msk [vmem:[%s191] sm:$0xff] %vm59, %v187
  // Predicated region
  $region38: #{_lambda_.1} parent=0 // pred_check
    _
  $region39: #{_lambda_.1} parent=0 // pred_check_branch
    %194 = sbr.rel (0) target = $region41
  $region40: #{_lambda_.1} parent=0 // pred_region
    _
  $region41: #{_lambda_.1} parent=0 // pred_fallthru
    _
  // Predicated region
  $region42: #{_lambda_.1} parent=0 // pred_check
    _
  $region43: #{_lambda_.1} parent=0 // pred_check_branch
    %196 = sbr.rel (0) target = $region45
  $region44: #{_lambda_.1} parent=0 // pred_region
    _
  $region45: #{_lambda_.1} parent=0 // pred_fallthru
    _

</llo_original>
